<compile_context>
chip_gen: v7x
topology: tpu7x:2x2x1
jax: 0.10.0
libtpu: 0.0.40
codegen_flags: <defaults>
</compile_context>

<pallas_src>
import jax
import jax.numpy as jnp
from jax.experimental import pallas as pl
from jax.experimental.pallas import tpu as pltpu

LANE = 128      # vreg lane width: batch axis is padded to this (lane-dense out)
SUBLANE = 8     # f32 sublane tile


def _round_up(x, m):
    return ((x + m - 1) // m) * m


def bnn_mc_kernel(xT_ref, w1_ref, w2_ref, b2_ref, o_ref):
    """Fused fc1 -> ReLU -> fc2 for a block of S_blk Monte-Carlo samples.

    Transposed layout (batch on the 128-wide lane axis):
      xT_ref : (D_aug_pad,        B_pad)        f32  shared input, ones-row folds b1
      w1_ref : (S_blk*H_pad,      D_aug_pad)    f32  stacked per-sample fc1 [W|b]
      w2_ref : (S_blk*D_out,      S_blk*H_pad)  f32  block-diagonal fc2 weights
      b2_ref : (S_blk*D_out,      1)            f32
      o_ref  : (S_blk*D_out,      B_pad)        f32  lane-dense output block
    """
    # Pass 1: all samples in this block share one MXU matmul (S folded into M).
    hT = jnp.dot(w1_ref[...], xT_ref[...],
                 preferred_element_type=jnp.float32)          # (S_blk*H_pad, B_pad)
    hT = jnp.maximum(hT, 0.0)                                  # ReLU (bias already folded)
    # Pass 2: one M = S_blk*D_out matmul via the block-diagonal fc2 slab
    # (replaces S_blk separate 1-row MXU matmuls).
    yT = jnp.dot(w2_ref[...], hT,
                 preferred_element_type=jnp.float32)          # (S_blk*D_out, B_pad)
    o_ref[...] = (yT + b2_ref[...]).astype(o_ref.dtype)


@jax.jit
def bayesian_nn_mc_forward(x, w1_s, b1_s, w2_s, b2_s):
    """BayesianNN forward for S sampled weight sets in one pallas_call.

    x    : (B, D_in)      f32  shared input batch
    w1_s : (S, H, D_in)   f32  sampled fc1 weights (PyTorch (out, in) layout)
    b1_s : (S, H)         f32
    w2_s : (S, D_out, H)  f32
    b2_s : (S, D_out)     f32
    returns (S, B, D_out) f32
    """
    S, H, D_in = w1_s.shape
    D_out = w2_s.shape[1]
    B = x.shape[0]

    B_pad = _round_up(B, LANE)            # lane-dense output / MXU N dim
    H_pad = _round_up(H, 2 * SUBLANE)     # 10 -> 16 (NOT 128: H is an M/K dim)
    D_aug = D_in + 1                      # +1 ones-row folds the fc1 bias
    D_aug_pad = _round_up(D_aug, SUBLANE)

    # 2 grid steps over S keep both v7x TensorCores busy; fall back to 1 step
    # if the 2-way split would break the (8,128) block-tiling rules.
    num_blocks = 1
    if (S % 2 == 0
            and ((S // 2) * H_pad) % LANE == 0
            and ((S // 2) * D_out) % SUBLANE == 0):
        num_blocks = 2
    S_blk = S // num_blocks

    f32 = jnp.float32
    # NOTE: under jit this prep fuses with the kernel call; if the sampled
    # weights are reused across calls, hoist this packing out of the hot path.

    # Shared input, transposed + augmented with a ones-row (folds b1).
    xT = jnp.zeros((D_aug_pad, B_pad), f32)
    xT = xT.at[:D_in, :B].set(x.T.astype(f32))
    xT = xT.at[D_in, :B].set(1.0)

    # fc1: per-sample (H, D_in) weights with bias appended as an extra column,
    # zero-padded H -> H_pad, all samples stacked along the matmul M dim.
    w1 = jnp.zeros((S, H_pad, D_aug_pad), f32)
    w1 = w1.at[:, :H, :D_in].set(w1_s.astype(f32))
    w1 = w1.at[:, :H, D_in].set(b1_s.astype(f32))
    w1 = w1.reshape(S * H_pad, D_aug_pad)

    # fc2: block-diagonal (S*D_out, S*H_pad) so each sample's w2 row only hits
    # its own hidden rows; the kernel then needs a single matmul per step.
    w2p = jnp.zeros((S, D_out, H_pad), f32).at[:, :, :H].set(w2_s.astype(f32))
    eye = jnp.eye(S, dtype=f32)
    w2 = jnp.einsum("st,sdh->sdth", eye, w2p).reshape(S * D_out, S * H_pad)

    b2 = b2_s.reshape(S * D_out, 1).astype(f32)

    yT = pl.pallas_call(
        bnn_mc_kernel,
        out_shape=jax.ShapeDtypeStruct((S * D_out, B_pad), f32),
        grid=(num_blocks,),
        in_specs=[
            pl.BlockSpec((D_aug_pad, B_pad), lambda i: (0, 0)),            # shared x^T
            pl.BlockSpec((S_blk * H_pad, D_aug_pad), lambda i: (i, 0)),    # fc1 slab
            pl.BlockSpec((S_blk * D_out, S_blk * H_pad), lambda i: (i, i)),# diag fc2 block
            pl.BlockSpec((S_blk * D_out, 1), lambda i: (i, 0)),            # fc2 bias
        ],
        out_specs=pl.BlockSpec((S_blk * D_out, B_pad), lambda i: (i, 0)),
        compiler_params=pltpu.CompilerParams(
            dimension_semantics=("parallel",),   # shard the 2 S-blocks across v7x TCs
        ),
    )(xT, w1, w2, b2)

    # (S*D_out, B_pad) -> (S, B, D_out), dropping batch padding.
    return jnp.transpose(yT.reshape(S, D_out, B_pad)[:, :, :B], (0, 2, 1))


def bayesian_nn_forward(x, w1, b1, w2, b2):
    """Single-weight-set forward matching BayesianNN.forward exactly.

    w1: (H, D_in), b1: (H,), w2: (D_out, H), b2: (D_out,) -- PyTorch layouts.
    Returns (B, D_out)."""
    return bayesian_nn_mc_forward(x, w1[None], b1[None], w2[None], b2[None])[0]


if __name__ == "__main__":
    # TODO(synk): calculate_likelihood / calculate_prior / calculate_posterior are
    # scalar log-prob reductions outside the forward pass; not implemented as kernels.
    input_size, hidden_size, output_size = 16, 10, 1   # X_train.shape[1]=16 stand-in
    batch, n_samples = 8, 16

    key = jax.random.PRNGKey(0)
    kx, kw1, kb1, kw2, kb2 = jax.random.split(key, 5)
    x = jax.random.normal(kx, (batch, input_size), jnp.float32)

    # S Monte-Carlo weight samples from the Gaussian prior/posterior
    # (prior_mean=0, prior_std=1; scaled for a sane ReLU regime).
    w1_s = 0.3 * jax.random.normal(kw1, (n_samples, hidden_size, input_size), jnp.float32)
    b1_s = 0.3 * jax.random.normal(kb1, (n_samples, hidden_size), jnp.float32)
    w2_s = 0.3 * jax.random.normal(kw2, (n_samples, output_size, hidden_size), jnp.float32)
    b2_s = 0.3 * jax.random.normal(kb2, (n_samples, output_size), jnp.float32)

    # --- fused MC kernel: all samples in (at most) two grid steps ---
    y = jax.block_until_ready(bayesian_nn_mc_forward(x, w1_s, b1_s, w2_s, b2_s))
    assert y.shape == (n_samples, batch, output_size)

    # --- reference: plain f32 JAX math (torch fp32 Linear semantics) ---
    hp = jax.lax.Precision.HIGHEST
    h = jnp.maximum(jnp.einsum("bi,shi->sbh", x, w1_s, precision=hp)
                    + b1_s[:, None, :], 0.0)
    y_ref = jnp.einsum("sbh,soh->sbo", h, w2_s, precision=hp) + b2_s[:, None, :]
    err = float(jnp.max(jnp.abs(y - y_ref)))
    # Tolerance covers the MXU's f32 multi-pass accumulation.
    assert err < 3e-2, err

    # --- single-sample path matches the module's forward(x) semantics ---
    y0 = jax.block_until_ready(bayesian_nn_forward(x, w1_s[0], b1_s[0], w2_s[0], b2_s[0]))
    assert y0.shape == (batch, output_size)
    assert jnp.allclose(y0, y[0], atol=1e-4, rtol=1e-4)

    print("KERNEL_OK")
</pallas_src>

<mosaic_0001>
module attributes {stable_mosaic.version = 11 : i64} {
  func.func @bnn_mc_kernel(%arg0: i32, %arg1: memref<24x128xf32, #tpu.memory_space<vmem>>, %arg2: memref<128x24xf32, #tpu.memory_space<vmem>>, %arg3: memref<8x128xf32, #tpu.memory_space<vmem>>, %arg4: memref<8x1xf32, #tpu.memory_space<vmem>>, %arg5: memref<8x128xf32, #tpu.memory_space<vmem>>) attributes {dimension_semantics = [#tpu.dimension_semantics<parallel>], iteration_bounds = array<i64: 2>, scalar_prefetch = 0 : i64, scratch_operands = 0 : i64, tpu.core_type = #tpu.core_type<tc>, window_params = [{pipeline_mode = #tpu.pipeline_mode<synchronous>, transform_indices = @transform_0, window_bounds = array<i64: 24, 128>}, {transform_indices = @transform_1, window_bounds = array<i64: 128, 24>}, {transform_indices = @transform_2, window_bounds = array<i64: 8, 128>}, {transform_indices = @transform_3, window_bounds = array<i64: 8, 1>}, {transform_indices = @transform_4, window_bounds = array<i64: 8, 128>}]} {
    %c0 = arith.constant 0 : index
    %c0_0 = arith.constant 0 : index
    %0 = vector.load %arg2[%c0, %c0_0] : memref<128x24xf32, #tpu.memory_space<vmem>>, vector<128x24xf32>
    %c0_1 = arith.constant 0 : index
    %c0_2 = arith.constant 0 : index
    %1 = vector.load %arg1[%c0_1, %c0_2] : memref<24x128xf32, #tpu.memory_space<vmem>>, vector<24x128xf32>
    %cst = arith.constant dense<0.000000e+00> : vector<128x128xf32>
    %2 = tpu.matmul %0, %1, %cst {dimension_numbers = #tpu.dot_dimension_numbers<[1], [0], [0], [1], [0, 0, 1, 1], [], []>} : vector<128x24xf32>, vector<24x128xf32>, vector<128x128xf32> -> vector<128x128xf32>
    %cst_3 = arith.constant 0.000000e+00 : f32
    %3 = vector.broadcast %cst_3 : f32 to vector<128x128xf32>
    %4 = arith.maximumf %2, %3 : vector<128x128xf32>
    %c0_4 = arith.constant 0 : index
    %c0_5 = arith.constant 0 : index
    %5 = vector.load %arg3[%c0_4, %c0_5] : memref<8x128xf32, #tpu.memory_space<vmem>>, vector<8x128xf32>
    %cst_6 = arith.constant dense<0.000000e+00> : vector<8x128xf32>
    %6 = tpu.matmul %5, %4, %cst_6 {dimension_numbers = #tpu.dot_dimension_numbers<[1], [0], [0], [1], [0, 0, 1, 1], [], []>} : vector<8x128xf32>, vector<128x128xf32>, vector<8x128xf32> -> vector<8x128xf32>
    %c0_7 = arith.constant 0 : index
    %c0_8 = arith.constant 0 : index
    %7 = vector.load %arg4[%c0_7, %c0_8] : memref<8x1xf32, #tpu.memory_space<vmem>>, vector<8x1xf32>
    %8 = vector.broadcast %7 : vector<8x1xf32> to vector<8x128xf32>
    %9 = arith.addf %6, %8 : vector<8x128xf32>
    %c0_9 = arith.constant 0 : index
    %c0_10 = arith.constant 0 : index
    %10 = vector.load %arg5[%c0_9, %c0_10] : memref<8x128xf32, #tpu.memory_space<vmem>>, vector<8x128xf32>
    tpu.vector_store %arg5[%c0_9, %c0_10], %9 {strides = array<i32>} : memref<8x128xf32, #tpu.memory_space<vmem>>, vector<8x128xf32>,
    return
  }
  func.func @transform_0(%arg0: i32) -> (i32, i32) {
    %c0_i32 = arith.constant 0 : i32
    %c0_i32_0 = arith.constant 0 : i32
    %c0_i32_1 = arith.constant 0 : i32
    return %c0_i32, %c0_i32_0 : i32, i32
  }
  func.func @transform_1(%arg0: i32) -> (i32, i32) {
    %c0_i32 = arith.constant 0 : i32
    %c0_i32_0 = arith.constant 0 : i32
    return %arg0, %c0_i32 : i32, i32
  }
  func.func @transform_2(%arg0: i32) -> (i32, i32) {
    %c0_i32 = arith.constant 0 : i32
    return %arg0, %arg0 : i32, i32
  }
  func.func @transform_3(%arg0: i32) -> (i32, i32) {
    %c0_i32 = arith.constant 0 : i32
    %c0_i32_0 = arith.constant 0 : i32
    return %arg0, %c0_i32 : i32, i32
  }
  func.func @transform_4(%arg0: i32) -> (i32, i32) {
    %c0_i32 = arith.constant 0 : i32
    %c0_i32_0 = arith.constant 0 : i32
    return %arg0, %c0_i32 : i32, i32
  }
}

</mosaic_0001>

<llo_original>
// kernel: bayesian_nn_mc_forward.1
$region0: #{bayesian_nn_mc_forward.1}
  #allocation0 [shape = 'u32[]', space=smem, size = 0x4, offset = 0x4, fixed_abs, tag = 'smem constant byte address 0x4 - core index']
  #allocation1 [shape = 'u32[144,128]{1,0:T(1,128)}', space=vmem, size = 0x12000, scoped, tag = 'internal scratch']
  %s0 = inlined_call_operand.vmem [shape: f32[24,128], index: 0, kind: input, shape index: {}]
  %s1 = inlined_call_operand.vmem [shape: f32[256,24], index: 1, kind: input, shape index: {}]
  %s2 = inlined_call_operand.vmem [shape: f32[16,256], index: 2, kind: input, shape index: {}]
  %s3 = inlined_call_operand.vmem [shape: f32[16,1], index: 3, kind: input, shape index: {}]
  %s4 = inlined_call_operand.vmem [shape: f32[16,128], index: 4, kind: output, shape index: {}]
  %s5 = sld [smem:[#allocation0]]
  $region49: #{bayesian_nn_mc_forward.1} parent=0
    _
  %s7 = ssub.s32 1, %s5
  %s8 = scalar_select 0, %s7, %s5
  loop: start=0, step=1, limit=4
  $region2: #{bayesian_nn_mc_forward.1} parent=0 // loop_pre_header
    _
  $region3: #{bayesian_nn_mc_forward.1} parent=0 // loop_header
    %s10 = sphi 0, %s14
    %p11 = scmp.ge.s32.totalorder %s10, 4
    %s18 = sphi 0, %s18
    %s20 = sphi 0, %s18
    %s21 = sphi 0, %s20
    %s35 = sphi 0, %s21
    %s41 = sphi 0, %s43
    %s44 = sphi 0, %s41
    %s45 = sphi 0, %s44
    %s61 = sphi 0, %s45
    %s69 = sphi 0, %s71
    %s72 = sphi 0, %s69
    %s73 = sphi 0, %s72
    %s89 = sphi 0, %s73
    %s95 = sphi 0, %s97
    %s98 = sphi 0, %s95
    %s99 = sphi 0, %s98
    %s115 = sphi 0, %s99
    %s121 = sphi 0, %s123
    %s124 = sphi 0, %s121
    %s125 = sphi 0, %s124
    %s141 = sphi 0, %s125
  $region4: #{bayesian_nn_mc_forward.1} parent=0 // loop_header_branch
    %13 = sbr.rel (%p11) target = $region8
  $region5: #{bayesian_nn_mc_forward.1} parent=0 // loop_body
    %s15 = ssub.s32 %s10, 1
    %s16 = ssub.s32 %s10, 2
    %s17 = sadd.s32 %s10, 1
    %s19 = sadd.s32 %s18, 1
    %p22 = scmp.eq.s32.totalorder %s10, 1
    %p23 = scmp.ne.s32.totalorder %s18, %s20
    %p24 = scmp.eq.s32.totalorder %s10, 0
    %p25 = por %p23, %p24
    %p26 = scmp.ne.s32.totalorder %s18, %s20
    %p27 = scmp.eq.s32.totalorder %s15, 1
    %p28 = por %p26, %p27
    %p29 = scmp.ne.s32.totalorder %s20, %s21
    %p30 = scmp.eq.s32.totalorder %s15, 0
    %p31 = por %p29, %p30
    %p32 = scmp.ne.s32.totalorder %s20, %s21
    %p33 = scmp.eq.s32.totalorder %s16, 1
    %p34 = por %p32, %p33
    %p36 = scmp.ne.s32.totalorder %s21, %s35
    %p37 = scmp.eq.s32.totalorder %s16, 0
    %p38 = por %p36, %p37
    %s39 = ssub.s32 %s10, %s17
    %p40 = scmp.eq.s32.totalorder %s39, 0
    %s42 = sadd.s32 %s41, 1
    %s43 = scalar_select %p40, %s41, %s42
    %p46 = pneg %p40
    %p47 = scmp.eq.s32.totalorder %s10, 1
    %p48 = por %p46, %p47
    %p49 = scmp.ne.s32.totalorder %s41, %s44
    %p50 = scmp.eq.s32.totalorder %s10, 0
    %p51 = por %p49, %p50
    %p52 = scmp.ne.s32.totalorder %s41, %s44
    %p53 = scmp.eq.s32.totalorder %s15, 1
    %p54 = por %p52, %p53
    %p55 = scmp.ne.s32.totalorder %s44, %s45
    %p56 = scmp.eq.s32.totalorder %s15, 0
    %p57 = por %p55, %p56
    %p58 = scmp.ne.s32.totalorder %s44, %s45
    %p59 = scmp.eq.s32.totalorder %s16, 1
    %p60 = por %p58, %p59
    %p62 = scmp.ne.s32.totalorder %s45, %s61
    %p63 = scmp.eq.s32.totalorder %s16, 0
    %p64 = por %p62, %p63
    %s65 = ssub.s32 %s10, %s17
    %s66 = ssub.s32 %s10, %s17
    %s67 = sor.u32 %s65, %s66
    %p68 = scmp.eq.s32.totalorder %s67, 0
    %s70 = sadd.s32 %s69, 1
    %s71 = scalar_select %p68, %s69, %s70
    %p74 = pneg %p68
    %p75 = scmp.eq.s32.totalorder %s10, 1
    %p76 = por %p74, %p75
    %p77 = scmp.ne.s32.totalorder %s69, %s72
    %p78 = scmp.eq.s32.totalorder %s10, 0
    %p79 = por %p77, %p78
    %p80 = scmp.ne.s32.totalorder %s69, %s72
    %p81 = scmp.eq.s32.totalorder %s15, 1
    %p82 = por %p80, %p81
    %p83 = scmp.ne.s32.totalorder %s72, %s73
    %p84 = scmp.eq.s32.totalorder %s15, 0
    %p85 = por %p83, %p84
    %p86 = scmp.ne.s32.totalorder %s72, %s73
    %p87 = scmp.eq.s32.totalorder %s16, 1
    %p88 = por %p86, %p87
    %p90 = scmp.ne.s32.totalorder %s73, %s89
    %p91 = scmp.eq.s32.totalorder %s16, 0
    %p92 = por %p90, %p91
    %s93 = ssub.s32 %s10, %s17
    %p94 = scmp.eq.s32.totalorder %s93, 0
    %s96 = sadd.s32 %s95, 1
    %s97 = scalar_select %p94, %s95, %s96
    %p100 = pneg %p94
    %p101 = scmp.eq.s32.totalorder %s10, 1
    %p102 = por %p100, %p101
    %p103 = scmp.ne.s32.totalorder %s95, %s98
    %p104 = scmp.eq.s32.totalorder %s10, 0
    %p105 = por %p103, %p104
    %p106 = scmp.ne.s32.totalorder %s95, %s98
    %p107 = scmp.eq.s32.totalorder %s15, 1
    %p108 = por %p106, %p107
    %p109 = scmp.ne.s32.totalorder %s98, %s99
    %p110 = scmp.eq.s32.totalorder %s15, 0
    %p111 = por %p109, %p110
    %p112 = scmp.ne.s32.totalorder %s98, %s99
    %p113 = scmp.eq.s32.totalorder %s16, 1
    %p114 = por %p112, %p113
    %p116 = scmp.ne.s32.totalorder %s99, %s115
    %p117 = scmp.eq.s32.totalorder %s16, 0
    %p118 = por %p116, %p117
    %s119 = ssub.s32 %s10, %s17
    %p120 = scmp.eq.s32.totalorder %s119, 0
    %s122 = sadd.s32 %s121, 1
    %s123 = scalar_select %p120, %s121, %s122
    %p126 = pneg %p120
    %p127 = scmp.eq.s32.totalorder %s10, 1
    %p128 = por %p126, %p127
    %p129 = scmp.ne.s32.totalorder %s121, %s124
    %p130 = scmp.eq.s32.totalorder %s10, 0
    %p131 = por %p129, %p130
    %p132 = scmp.ne.s32.totalorder %s121, %s124
    %p133 = scmp.eq.s32.totalorder %s15, 1
    %p134 = por %p132, %p133
    %p135 = scmp.ne.s32.totalorder %s124, %s125
    %p136 = scmp.eq.s32.totalorder %s15, 0
    %p137 = por %p135, %p136
    %p138 = scmp.ne.s32.totalorder %s124, %s125
    %p139 = scmp.eq.s32.totalorder %s16, 1
    %p140 = por %p138, %p139
    %p142 = scmp.ne.s32.totalorder %s125, %s141
    %p143 = scmp.eq.s32.totalorder %s16, 0
    %p144 = por %p142, %p143
    %p145 = scmp.le.s32.totalorder 1, %s10
    %p146 = scmp.lt.s32.totalorder %s10, 3
    %p147 = pnand %p145, %p146
    %p148 = pneg %p147
    // Predicated region
    $region9: #{bayesian_nn_mc_forward.1} parent=5 // pred_check
      _
    $region10: #{bayesian_nn_mc_forward.1} parent=5 // pred_check_branch
      %150 = sbr.rel (%p147) target = $region12
    $region11: #{bayesian_nn_mc_forward.1} parent=5 // pred_region
      %s151 = ssub.s32 %s10, 1
      // Predicated region
      $region13: #{bayesian_nn_mc_forward.1} parent=11 // pred_check
        %p152 = pneg %p31
      $region14: #{bayesian_nn_mc_forward.1} parent=11 // pred_check_branch
        %154 = sbr.rel (%p152) target = $region16
      $region15: #{bayesian_nn_mc_forward.1} parent=11 // pred_region
        _
      $region16: #{bayesian_nn_mc_forward.1} parent=11 // pred_fallthru
        _
    $region12: #{bayesian_nn_mc_forward.1} parent=5 // pred_fallthru
      _
    %p155 = scmp.lt.s32.totalorder %s10, 2
    // Predicated region
    $region17: #{bayesian_nn_mc_forward.1} parent=5 // pred_check
      %p156 = pneg %p155
    $region18: #{bayesian_nn_mc_forward.1} parent=5 // pred_check_branch
      %158 = sbr.rel (%p156) target = $region20
    $region19: #{bayesian_nn_mc_forward.1} parent=5 // pred_region
      // Predicated region
      $region21: #{bayesian_nn_mc_forward.1} parent=19 // pred_check
        %p159 = pneg %p51
      $region22: #{bayesian_nn_mc_forward.1} parent=19 // pred_check_branch
        %161 = sbr.rel (%p159) target = $region24
      $region23: #{bayesian_nn_mc_forward.1} parent=19 // pred_region
        %s162 = smul.u32 16, %s10
        %p163 = scmp.lt.s32.totalorder %s162, 31
        %s164 = scalar_select %p163, %s162, 31
        %s165 = smul.addr %s164, 8
        %s166 = scalar_lea.vmem %s1, %s165
        %s167 = smul.u32 16, %s10
      $region24: #{bayesian_nn_mc_forward.1} parent=19 // pred_fallthru
        _
      // Predicated region
      $region25: #{bayesian_nn_mc_forward.1} parent=19 // pred_check
        %p168 = pneg %p79
      $region26: #{bayesian_nn_mc_forward.1} parent=19 // pred_check_branch
        %170 = sbr.rel (%p168) target = $region28
      $region27: #{bayesian_nn_mc_forward.1} parent=19 // pred_region
        %p171 = scmp.lt.s32.totalorder %s10, 1
        %s172 = scalar_select %p171, %s10, 1
        %p173 = scmp.lt.s32.totalorder %s10, 1
        %s174 = scalar_select %p173, %s10, 1
        %s175 = smul.addr %s172, 2
        %s176 = sadd.s32 %s174, %s175
        %s177 = smul.addr %s176, 8
        %s178 = scalar_lea.vmem %s2, %s177
      $region28: #{bayesian_nn_mc_forward.1} parent=19 // pred_fallthru
        _
      // Predicated region
      $region29: #{bayesian_nn_mc_forward.1} parent=19 // pred_check
        %p179 = pneg %p105
      $region30: #{bayesian_nn_mc_forward.1} parent=19 // pred_check_branch
        %181 = sbr.rel (%p179) target = $region32
      $region31: #{bayesian_nn_mc_forward.1} parent=19 // pred_region
        %p182 = scmp.lt.s32.totalorder %s10, 1
        %s183 = scalar_select %p182, %s10, 1
        %s184 = smul.addr %s183, 8
        %s185 = scalar_lea.vmem %s3, %s184
      $region32: #{bayesian_nn_mc_forward.1} parent=19 // pred_fallthru
        _
    $region20: #{bayesian_nn_mc_forward.1} parent=5 // pred_fallthru
      _
    %p186 = scmp.le.s32.totalorder 1, %s10
    %p187 = scmp.lt.s32.totalorder %s10, 3
    %p188 = pnand %p186, %p187
    %p189 = pneg %p188
    // Predicated region
    $region33: #{bayesian_nn_mc_forward.1} parent=5 // pred_check
      _
    $region34: #{bayesian_nn_mc_forward.1} parent=5 // pred_check_branch
      %191 = sbr.rel (%p188) target = $region36
    $region35: #{bayesian_nn_mc_forward.1} parent=5 // pred_region
      %s192 = ssub.s32 %s10, 1
      %p193 = pneg %p31
      %p194 = pneg %p28
      %s195 = smul.u32 16, %s15
      %p196 = scmp.lt.s32.totalorder %s195, 31
      %s197 = scalar_select %p196, %s195, 31
      %s198 = smul.addr %s197, 8
      %s199 = scalar_lea.vmem %s1, %s198
      %p200 = pneg %p57
      %p201 = pneg %p54
      %p202 = scmp.lt.s32.totalorder %s15, 1
      %s203 = scalar_select %p202, %s15, 1
      %p204 = scmp.lt.s32.totalorder %s15, 1
      %s205 = scalar_select %p204, %s15, 1
      %s206 = smul.addr %s203, 2
      %s207 = sadd.s32 %s205, %s206
      %s208 = smul.addr %s207, 8
      %s209 = scalar_lea.vmem %s2, %s208
      %p210 = pneg %p85
      %p211 = pneg %p82
      %p212 = scmp.lt.s32.totalorder %s15, 1
      %s213 = scalar_select %p212, %s15, 1
      %s214 = smul.addr %s213, 8
      %s215 = scalar_lea.vmem %s3, %s214
      %p216 = pneg %p111
      %p217 = pneg %p108
      %p218 = pneg %p137
      %p219 = pneg %p134
      %p220 = scmp.lt.s32.totalorder %s15, 1
      %s221 = scalar_select %p220, %s15, 1
      %s222 = smul.addr %s221, 8
      %s223 = scalar_lea.vmem %s4, %s222
      %s224 = smul.u32 16, %s15
      %p225 = scmp.lt.s32.totalorder %s224, 31
      %s226 = scalar_select %p225, %s224, 31
      %s227 = smul.addr %s226, 8
      %s228 = scalar_lea.vmem %s1, %s227
      %s229 = smul.u32 16, %s15
      %p230 = scmp.lt.s32.totalorder %s15, 1
      %s231 = scalar_select %p230, %s15, 1
      %p232 = scmp.lt.s32.totalorder %s15, 1
      %s233 = scalar_select %p232, %s15, 1
      %s234 = smul.addr %s231, 2
      %s235 = sadd.s32 %s233, %s234
      %s236 = smul.addr %s235, 8
      %s237 = scalar_lea.vmem %s2, %s236
      %p238 = scmp.lt.s32.totalorder %s15, 1
      %s239 = scalar_select %p238, %s15, 1
      %s240 = smul.addr %s239, 8
      %s241 = scalar_lea.vmem %s3, %s240
      %p242 = scmp.lt.s32.totalorder %s15, 1
      %s243 = scalar_select %p242, %s15, 1
      %s244 = smul.addr %s243, 8
      %s245 = scalar_lea.vmem %s4, %s244
      %v246 = vld [vmem:[%s228] sm:$0xff]
      %v247 = vld [vmem:[%s228 + $0x8] sm:$0xff]
      %v248 = vld [vmem:[%s228 + $0x10] sm:$0xff]
      %v249 = vld [vmem:[%s228 + $0x18] sm:$0xff]
      %v250 = vld [vmem:[%s228 + $0x20] sm:$0xff]
      %v251 = vld [vmem:[%s228 + $0x28] sm:$0xff]
      %v252 = vld [vmem:[%s228 + $0x30] sm:$0xff]
      %v253 = vld [vmem:[%s228 + $0x38] sm:$0xff]
      %v254 = vld [vmem:[%s228 + $0x40] sm:$0xff]
      %v255 = vld [vmem:[%s228 + $0x48] sm:$0xff]
      %v256 = vld [vmem:[%s228 + $0x50] sm:$0xff]
      %v257 = vld [vmem:[%s228 + $0x58] sm:$0xff]
      %v258 = vld [vmem:[%s228 + $0x60] sm:$0xff]
      %v259 = vld [vmem:[%s228 + $0x68] sm:$0xff]
      %v260 = vld [vmem:[%s228 + $0x70] sm:$0xff]
      %v261 = vld [vmem:[%s228 + $0x78] sm:$0xff]
      %v262 = vld [vmem:[%s0] sm:$0xff]
      %v263 = vld [vmem:[%s0 + $0x8] sm:$0xff]
      %v264 = vld [vmem:[%s0 + $0x10] sm:$0xff]
      %vm265 = vcmask 195584
      %v267 = vsel %vm265, %v246, 0
      %v270 = vsel %vm265, %v247, 0
      %v273 = vsel %vm265, %v248, 0
      %v276 = vsel %vm265, %v249, 0
      %v279 = vsel %vm265, %v250, 0
      %v282 = vsel %vm265, %v251, 0
      %v285 = vsel %vm265, %v252, 0
      %v288 = vsel %vm265, %v253, 0
      %v291 = vsel %vm265, %v254, 0
      %v294 = vsel %vm265, %v255, 0
      %v297 = vsel %vm265, %v256, 0
      %v300 = vsel %vm265, %v257, 0
      %v303 = vsel %vm265, %v258, 0
      %v306 = vsel %vm265, %v259, 0
      %v309 = vsel %vm265, %v260, 0
      %v312 = vsel %vm265, %v261, 0
      %314 = vmatprep.subr.mxu0 0.0
      %315 = vmatpush1.msra.mxu0 %v262
      %316 = vmatprep.subr.mxu0 0.0
      %317 = vmatpush1.msra.mxu0 %v263
      %318 = vmatprep.subr.mxu0 0.0
      %319 = vmatpush1.msra.mxu0 %v264
      %320 = vmatprep.subr.mxu0 0.0
      %321 = vmatpush1.msra.mxu0 0.0
      %322 = vmatprep.subr.mxu0 0.0
      %323 = vmatpush1.msra.mxu0 0.0
      %324 = vmatprep.subr.mxu0 0.0
      %325 = vmatpush1.msra.mxu0 0.0
      %326 = vmatprep.subr.mxu0 0.0
      %327 = vmatpush1.msra.mxu0 0.0
      %328 = vmatprep.subr.mxu0 0.0
      %329 = vmatpush1.msra.mxu0 0.0
      %330 = vmatprep.subr.mxu0 0.0
      %331 = vmatpush1.msra.mxu0 0.0
      %332 = vmatprep.subr.mxu0 0.0
      %333 = vmatpush1.msra.mxu0 0.0
      %334 = vmatprep.subr.mxu0 0.0
      %335 = vmatpush1.msra.mxu0 0.0
      %336 = vmatprep.subr.mxu0 0.0
      %337 = vmatpush1.msra.mxu0 0.0
      %338 = vmatprep.subr.mxu0 0.0
      %339 = vmatpush1.msra.mxu0 0.0
      %340 = vmatprep.subr.mxu0 0.0
      %341 = vmatpush1.msra.mxu0 0.0
      %342 = vmatprep.subr.mxu0 0.0
      %343 = vmatpush1.msra.mxu0 0.0
      %344 = vmatprep.subr.mxu0 0.0
      %345 = vmatpush1.msra.mxu0 0.0
      %346 = vmatprep.subr.mxu0 0.0
      %347 = vmatpush1.msra.mxu0 0.0
      %348 = vmatprep.subr.mxu0 0.0
      %349 = vmatpush1.msra.mxu0 0.0
      %350 = vmatprep.subr.mxu0 0.0
      %351 = vmatpush1.msra.mxu0 0.0
      %352 = vmatprep.subr.mxu0 0.0
      %353 = vmatpush1.msra.mxu0 0.0
      %354 = vmatprep.subr.mxu0 0.0
      %355 = vmatpush1.msra.mxu0 0.0
      %356 = vmatprep.subr.mxu0 0.0
      %357 = vmatpush1.msra.mxu0 0.0
      %358 = vmatprep.subr.mxu0 0.0
      %359 = vmatpush1.msra.mxu0 0.0
      %360 = vmatprep.subr.mxu0 0.0
      %361 = vmatpush1.msra.mxu0 0.0
      %362 = vmatprep.subr.mxu0 0.0
      %363 = vmatpush1.msra.mxu0 0.0
      %364 = vmatprep.subr.mxu0 0.0
      %365 = vmatpush1.msra.mxu0 0.0
      %366 = vmatprep.subr.mxu0 0.0
      %367 = vmatpush1.msra.mxu0 0.0
      %368 = vmatprep.subr.mxu0 0.0
      %369 = vmatpush1.msra.mxu0 0.0
      %370 = vmatprep.subr.mxu0 0.0
      %371 = vmatpush1.msra.mxu0 0.0
      %372 = vmatprep.subr.mxu0 0.0
      %373 = vmatpush1.msra.mxu0 0.0
      %374 = vmatprep.subr.mxu0 0.0
      %375 = vmatpush1.msra.mxu0 0.0
      %376 = vmatprep.subr.mxu0 0.0
      %377 = vmatpush1.msra.mxu0 0.0
      %378 = vmatprep.mubr.f32.mxu0 0.0
      %379 = vmatmul.mubr.f32.gmra.mrb[0].mxu0 %v267
      %v380 = vpop.f32.mrb[0].mxu0
      %v381 = vadd.f32 0.0, %v380
      %v382 = vpop.f32.mrb[0].mxu0
      %383 = vmatprep.mubr.f32.mxu0 0.0
      %384 = vmatmul.mubr.f32.gmra.mrb[0].mxu0 %v270
      %v385 = vpop.f32.mrb[0].mxu0
      %v386 = vadd.f32 0.0, %v385
      %v387 = vpop.f32.mrb[0].mxu0
      %388 = vmatprep.mubr.f32.mxu0 0.0
      %389 = vmatmul.mubr.f32.gmra.mrb[0].mxu0 %v273
      %v390 = vpop.f32.mrb[0].mxu0
      %v391 = vadd.f32 0.0, %v390
      %v392 = vpop.f32.mrb[0].mxu0
      %393 = vmatprep.mubr.f32.mxu0 0.0
      %394 = vmatmul.mubr.f32.gmra.mrb[0].mxu0 %v276
      %v395 = vpop.f32.mrb[0].mxu0
      %v396 = vadd.f32 0.0, %v395
      %v397 = vpop.f32.mrb[0].mxu0
      %398 = vmatprep.mubr.f32.mxu0 0.0
      %399 = vmatmul.mubr.f32.gmra.mrb[0].mxu0 %v279
      %v400 = vpop.f32.mrb[0].mxu0
      %v401 = vadd.f32 0.0, %v400
      %v402 = vpop.f32.mrb[0].mxu0
      %403 = vmatprep.mubr.f32.mxu0 0.0
      %404 = vmatmul.mubr.f32.gmra.mrb[0].mxu0 %v282
      %v405 = vpop.f32.mrb[0].mxu0
      %v406 = vadd.f32 0.0, %v405
      %v407 = vpop.f32.mrb[0].mxu0
      %408 = vmatprep.mubr.f32.mxu0 0.0
      %409 = vmatmul.mubr.f32.gmra.mrb[0].mxu0 %v285
      %v410 = vpop.f32.mrb[0].mxu0
      %v411 = vadd.f32 0.0, %v410
      %v412 = vpop.f32.mrb[0].mxu0
      %413 = vmatprep.mubr.f32.mxu0 0.0
      %414 = vmatmul.mubr.f32.gmra.mrb[0].mxu0 %v288
      %v415 = vpop.f32.mrb[0].mxu0
      %v416 = vadd.f32 0.0, %v415
      %v417 = vpop.f32.mrb[0].mxu0
      %418 = vmatprep.mubr.f32.mxu0 0.0
      %419 = vmatmul.mubr.f32.gmra.mrb[0].mxu0 %v291
      %v420 = vpop.f32.mrb[0].mxu0
      %v421 = vadd.f32 0.0, %v420
      %v422 = vpop.f32.mrb[0].mxu0
      %423 = vmatprep.mubr.f32.mxu0 0.0
      %424 = vmatmul.mubr.f32.gmra.mrb[0].mxu0 %v294
      %v425 = vpop.f32.mrb[0].mxu0
      %v426 = vadd.f32 0.0, %v425
      %v427 = vpop.f32.mrb[0].mxu0
      %428 = vmatprep.mubr.f32.mxu0 0.0
      %429 = vmatmul.mubr.f32.gmra.mrb[0].mxu0 %v297
      %v430 = vpop.f32.mrb[0].mxu0
      %v431 = vadd.f32 0.0, %v430
      %v432 = vpop.f32.mrb[0].mxu0
      %433 = vmatprep.mubr.f32.mxu0 0.0
      %434 = vmatmul.mubr.f32.gmra.mrb[0].mxu0 %v300
      %v435 = vpop.f32.mrb[0].mxu0
      %v436 = vadd.f32 0.0, %v435
      %v437 = vpop.f32.mrb[0].mxu0
      %438 = vmatprep.mubr.f32.mxu0 0.0
      %439 = vmatmul.mubr.f32.gmra.mrb[0].mxu0 %v303
      %v440 = vpop.f32.mrb[0].mxu0
      %v441 = vadd.f32 0.0, %v440
      %v442 = vpop.f32.mrb[0].mxu0
      %443 = vmatprep.mubr.f32.mxu0 0.0
      %444 = vmatmul.mubr.f32.gmra.mrb[0].mxu0 %v306
      %v445 = vpop.f32.mrb[0].mxu0
      %v446 = vadd.f32 0.0, %v445
      %v447 = vpop.f32.mrb[0].mxu0
      %448 = vmatprep.mubr.f32.mxu0 0.0
      %449 = vmatmul.mubr.f32.gmra.mrb[0].mxu0 %v309
      %v450 = vpop.f32.mrb[0].mxu0
      %v451 = vadd.f32 0.0, %v450
      %v452 = vpop.f32.mrb[0].mxu0
      %453 = vmatprep.mubr.f32.mxu0 0.0
      %454 = vmatmul.mubr.f32.gmra.mrb[0].mxu0 %v312
      %v455 = vpop.f32.mrb[0].mxu0
      %v456 = vadd.f32 0.0, %v455
      %v457 = vpop.f32.mrb[0].mxu0
      %458 = vdwg.mxu0
      %v459 = vmax.f32 %v381, 0.0
      %v460 = vmax.f32 %v386, 0.0
      %v461 = vmax.f32 %v391, 0.0
      %v462 = vmax.f32 %v396, 0.0
      %v463 = vmax.f32 %v401, 0.0
      %v464 = vmax.f32 %v406, 0.0
      %v465 = vmax.f32 %v411, 0.0
      %v466 = vmax.f32 %v416, 0.0
      %v467 = vmax.f32 %v421, 0.0
      %v468 = vmax.f32 %v426, 0.0
      %v469 = vmax.f32 %v431, 0.0
      %v470 = vmax.f32 %v436, 0.0
      %v471 = vmax.f32 %v441, 0.0
      %v472 = vmax.f32 %v446, 0.0
      %v473 = vmax.f32 %v451, 0.0
      %v474 = vmax.f32 %v456, 0.0
      %v475 = vld [vmem:[%s237] sm:$0xff]
      %v476 = vld [vmem:[%s241] sm:$0xff]
      %478 = vset.pattern.permute.xlu0 0
      %479 = vperm.xlu0 %478, %v476
      %v480 = vpop.permute.xlu0 %479
      %482 = vmatprep.subr.mxu0 0.0
      %483 = vmatpush1.msra.mxu0 %v459
      %484 = vmatprep.subr.mxu0 0.0
      %485 = vmatpush1.msra.mxu0 %v460
      %486 = vmatprep.subr.mxu0 0.0
      %487 = vmatpush1.msra.mxu0 %v461
      %488 = vmatprep.subr.mxu0 0.0
      %489 = vmatpush1.msra.mxu0 %v462
      %490 = vmatprep.subr.mxu0 0.0
      %491 = vmatpush1.msra.mxu0 %v463
      %492 = vmatprep.subr.mxu0 0.0
      %493 = vmatpush1.msra.mxu0 %v464
      %494 = vmatprep.subr.mxu0 0.0
      %495 = vmatpush1.msra.mxu0 %v465
      %496 = vmatprep.subr.mxu0 0.0
      %497 = vmatpush1.msra.mxu0 %v466
      %498 = vmatprep.subr.mxu0 0.0
      %499 = vmatpush1.msra.mxu0 %v467
      %500 = vmatprep.subr.mxu0 0.0
      %501 = vmatpush1.msra.mxu0 %v468
      %502 = vmatprep.subr.mxu0 0.0
      %503 = vmatpush1.msra.mxu0 %v469
      %504 = vmatprep.subr.mxu0 0.0
      %505 = vmatpush1.msra.mxu0 %v470
      %506 = vmatprep.subr.mxu0 0.0
      %507 = vmatpush1.msra.mxu0 %v471
      %508 = vmatprep.subr.mxu0 0.0
      %509 = vmatpush1.msra.mxu0 %v472
      %510 = vmatprep.subr.mxu0 0.0
      %511 = vmatpush1.msra.mxu0 %v473
      %512 = vmatprep.subr.mxu0 0.0
      %513 = vmatpush1.msra.mxu0 %v474
      %514 = vmatprep.subr.mxu0 0.0
      %515 = vmatpush1.msra.mxu0 0.0
      %516 = vmatprep.subr.mxu0 0.0
      %517 = vmatpush1.msra.mxu0 0.0
      %518 = vmatprep.subr.mxu0 0.0
      %519 = vmatpush1.msra.mxu0 0.0
      %520 = vmatprep.subr.mxu0 0.0
      %521 = vmatpush1.msra.mxu0 0.0
      %522 = vmatprep.subr.mxu0 0.0
      %523 = vmatpush1.msra.mxu0 0.0
      %524 = vmatprep.subr.mxu0 0.0
      %525 = vmatpush1.msra.mxu0 0.0
      %526 = vmatprep.subr.mxu0 0.0
      %527 = vmatpush1.msra.mxu0 0.0
      %528 = vmatprep.subr.mxu0 0.0
      %529 = vmatpush1.msra.mxu0 0.0
      %530 = vmatprep.subr.mxu0 0.0
      %531 = vmatpush1.msra.mxu0 0.0
      %532 = vmatprep.subr.mxu0 0.0
      %533 = vmatpush1.msra.mxu0 0.0
      %534 = vmatprep.subr.mxu0 0.0
      %535 = vmatpush1.msra.mxu0 0.0
      %536 = vmatprep.subr.mxu0 0.0
      %537 = vmatpush1.msra.mxu0 0.0
      %538 = vmatprep.subr.mxu0 0.0
      %539 = vmatpush1.msra.mxu0 0.0
      %540 = vmatprep.subr.mxu0 0.0
      %541 = vmatpush1.msra.mxu0 0.0
      %542 = vmatprep.subr.mxu0 0.0
      %543 = vmatpush1.msra.mxu0 0.0
      %544 = vmatprep.subr.mxu0 0.0
      %545 = vmatpush1.msra.mxu0 0.0
      %546 = vmatprep.mubr.f32.mxu0 0.0
      %547 = vmatmul.mubr.f32.gmra.mrb[0].mxu0 %v475
      %v548 = vpop.f32.mrb[0].mxu0
      %v549 = vadd.f32 %v480, %v548
      %v550 = vpop.f32.mrb[0].mxu0
      %551 = vdwg.mxu0
      %552 = vst [vmem:[%s245] sm:$0xff] %v549
      %p553 = scmp.lt.s32.totalorder %s15, 1
      %s554 = scalar_select %p553, %s15, 1
      %s555 = smul.addr %s554, 8
      %s556 = scalar_lea.vmem %s4, %s555
      // Predicated region
      $region37: #{bayesian_nn_mc_forward.1} parent=35 // pred_check
        %p557 = pneg %p134
      $region38: #{bayesian_nn_mc_forward.1} parent=35 // pred_check_branch
        %559 = sbr.rel (%p557) target = $region40
      $region39: #{bayesian_nn_mc_forward.1} parent=35 // pred_region
        _
      $region40: #{bayesian_nn_mc_forward.1} parent=35 // pred_fallthru
        _
    $region36: #{bayesian_nn_mc_forward.1} parent=5 // pred_fallthru
      _
    %p560 = scmp.le.s32.totalorder 2, %s10
    // Predicated region
    $region41: #{bayesian_nn_mc_forward.1} parent=5 // pred_check
      %p561 = pneg %p560
    $region42: #{bayesian_nn_mc_forward.1} parent=5 // pred_check_branch
      %563 = sbr.rel (%p561) target = $region44
    $region43: #{bayesian_nn_mc_forward.1} parent=5 // pred_region
      %s564 = ssub.s32 %s10, 2
      // Predicated region
      $region45: #{bayesian_nn_mc_forward.1} parent=43 // pred_check
        %p565 = pneg %p140
      $region46: #{bayesian_nn_mc_forward.1} parent=43 // pred_check_branch
        %567 = sbr.rel (%p565) target = $region48
      $region47: #{bayesian_nn_mc_forward.1} parent=43 // pred_region
        %p568 = scmp.lt.s32.totalorder %s16, 1
        %s569 = scalar_select %p568, %s16, 1
        %s570 = smul.addr %s569, 8
        %s571 = scalar_lea.vmem %s4, %s570
      $region48: #{bayesian_nn_mc_forward.1} parent=43 // pred_fallthru
        _
    $region44: #{bayesian_nn_mc_forward.1} parent=5 // pred_fallthru
      _
  $region6: #{bayesian_nn_mc_forward.1} parent=0 // loop_footer
    %s14 = sadd.s32 1, %s10
  $region7: #{bayesian_nn_mc_forward.1} parent=0 // loop_footer_branch
    %9 = sbr.rel target = $region3
  $region8: #{bayesian_nn_mc_forward.1} parent=0 // loop_exit
    _

</llo_original>
